<compile_context>
chip_gen: v5e
topology: v5e:2x2
jax: 0.10.0
libtpu: 0.0.40
codegen_flags: <defaults>
</compile_context>

<pallas_src>
import functools

import jax
import jax.numpy as jnp
from jax.experimental import pallas as pl
from jax.experimental.pallas import tpu as pltpu

_LANE = 128
_MAX_TILE_LANES = 8192  # lane-tile cap keeps double-buffered blocks well under VMEM (v5e/v7x safe)


def _make_cutouts_kernel(xw_ref, facs_ref, noise_ref, out_ref, *, kw):
    """One grid step == one lane-tile of output pixels, ALL cutouts at once.

    xw_ref   : VMEM (KW, TILE_P)    pooling-window elems (sublanes) x pixels (lanes)
    facs_ref : VMEM (cutn, 1)       per-cutout noise scales
    noise_ref: VMEM (cutn, TILE_P)  gaussian noise
    out_ref  : VMEM (cutn, TILE_P)
    """
    # Pool once per tile (shared by every cutout): unrolled add/max tree over
    # the small static window dim -> stays on the 4-wide VALU slot.
    row = xw_ref[0:1, :].astype(jnp.float32)             # (1, TILE_P)
    acc = row
    mx = row
    for r in range(1, kw):
        row = xw_ref[r:r + 1, :].astype(jnp.float32)
        acc = acc + row
        mx = jnp.maximum(mx, row)
    pooled = acc * (0.5 / kw) + mx * 0.5                  # (avg + max) / 2
    # TODO(synk): kornia RandomAffine/RandomPerspective/ColorJitter/RandomErasing
    # (stochastic image-space warps) have no clean Pallas equivalent; identity here.
    out = pooled + facs_ref[...] * noise_ref[...]         # broadcast FMA over cutn
    out_ref[...] = out.astype(out_ref.dtype)


def make_cutouts(x, facs, noise, *, cut_size, cutn):
    """x: (B, C, H, W).  facs: (cutn,).  noise: (cutn*B, C, S, S)."""
    B, C, H, W = x.shape
    S = cut_size
    assert H % S == 0 and W % S == 0, "divisible adaptive-pool bins only"
    # TODO(synk): general (non-divisible) adaptive pooling bin boundaries not implemented.
    assert B == 1, "reference facs broadcast (cutn,1,1,1) requires batch == 1"
    kH, kW = H // S, W // S
    KW = kH * kW
    P = B * C * S * S

    # Lane-dense layout: pixels on the lane axis, padded to a multiple of 128.
    TILE_P = min(-(-P // _LANE) * _LANE, _MAX_TILE_LANES)
    P_pad = -(-P // TILE_P) * TILE_P
    grid = (P_pad // TILE_P,)

    # layout: NCHW -> (kH*kW, B*C*S*S)  [window elems on sublanes, pixels on lanes]
    # TODO(synk): for non-toy image sizes, fuse this transpose into the kernel via
    # strided manual DMA gathers (memory_space=pl.ANY) to avoid an extra HBM round trip.
    xw = (x.reshape(B, C, S, kH, S, kW)
            .transpose(3, 5, 0, 1, 2, 4)
            .reshape(KW, P))
    noise_r = noise.reshape(cutn, P)
    if P_pad != P:
        xw = jnp.pad(xw, ((0, 0), (0, P_pad - P)))
        noise_r = jnp.pad(noise_r, ((0, 0), (0, P_pad - P)))
    facs_col = facs.reshape(cutn, 1).astype(jnp.float32)

    out = pl.pallas_call(
        functools.partial(_make_cutouts_kernel, kw=KW),
        out_shape=jax.ShapeDtypeStruct((cutn, P_pad), x.dtype),
        grid=grid,
        in_specs=[
            pl.BlockSpec((KW, TILE_P), lambda j: (0, j)),     # xw lane-tile
            pl.BlockSpec((cutn, 1), lambda j: (0, 0)),        # facs column (same every step)
            pl.BlockSpec((cutn, TILE_P), lambda j: (0, j)),   # noise lane-tile
        ],
        out_specs=pl.BlockSpec((cutn, TILE_P), lambda j: (0, j)),
        compiler_params=pltpu.CompilerParams(
            dimension_semantics=("parallel",)),               # disjoint tiles -> both TCs on v7x
    )(xw, facs_col, noise_r)

    return out[:, :P].reshape(cutn * B, C, S, S)


def _reference(x, facs, noise, cut_size, cutn):
    """Pure-JAX reference of the PyTorch forward (augs == identity)."""
    B, C, H, W = x.shape
    S = cut_size
    kH, kW = H // S, W // S
    xr = x.reshape(B, C, S, kH, S, kW)
    cut = (xr.mean(axis=(3, 5)) + xr.max(axis=(3, 5))) * 0.5
    batch = jnp.concatenate([cut] * cutn, axis=0)
    return batch + facs.reshape(cutn, 1, 1, 1) * noise


if __name__ == "__main__":
    # Config from the module __init__ (no learnable params; noise_fac = 0.1).
    cut_size, cutn, noise_fac = 8, 4, 0.1
    B, C, H, W = 1, 4, 16, 16   # B=1: the PyTorch facs broadcast requires it when cutn > 1

    key = jax.random.PRNGKey(0)
    kx, kf, kn = jax.random.split(key, 3)
    x = jax.random.normal(kx, (B, C, H, W), dtype=jnp.float32)
    facs = jax.random.uniform(kf, (cutn,), minval=0.0, maxval=noise_fac,
                              dtype=jnp.float32)
    noise = jax.random.normal(kn, (cutn * B, C, cut_size, cut_size),
                              dtype=jnp.float32)

    out = make_cutouts(x, facs, noise, cut_size=cut_size, cutn=cutn)
    out = jax.block_until_ready(out)

    ref = _reference(x, facs, noise, cut_size, cutn)
    assert out.shape == (cutn * B, C, cut_size, cut_size)
    assert jnp.allclose(out, ref, atol=1e-5, rtol=1e-5)

    print("KERNEL_OK")
</pallas_src>

<mosaic_0001>
module attributes {stable_mosaic.version = 11 : i64} {
  func.func @_make_cutouts_kernel(%arg0: i32, %arg1: memref<4x256xf32, #tpu.memory_space<vmem>>, %arg2: memref<4x1xf32, #tpu.memory_space<vmem>>, %arg3: memref<4x256xf32, #tpu.memory_space<vmem>>, %arg4: memref<4x256xf32, #tpu.memory_space<vmem>>) attributes {dimension_semantics = [#tpu.dimension_semantics<parallel>], iteration_bounds = array<i64: 1>, scalar_prefetch = 0 : i64, scratch_operands = 0 : i64, tpu.core_type = #tpu.core_type<tc>, window_params = [{transform_indices = @transform_0, window_bounds = array<i64: 4, 256>}, {pipeline_mode = #tpu.pipeline_mode<synchronous>, transform_indices = @transform_1, window_bounds = array<i64: 4, 1>}, {transform_indices = @transform_2, window_bounds = array<i64: 4, 256>}, {transform_indices = @transform_3, window_bounds = array<i64: 4, 256>}]} {
    %c0 = arith.constant 0 : index
    %c0_0 = arith.constant 0 : index
    %0 = vector.load %arg1[%c0, %c0_0] : memref<4x256xf32, #tpu.memory_space<vmem>>, vector<1x256xf32>
    %c1 = arith.constant 1 : index
    %c0_1 = arith.constant 0 : index
    %1 = vector.load %arg1[%c1, %c0_1] : memref<4x256xf32, #tpu.memory_space<vmem>>, vector<1x256xf32>
    %2 = arith.addf %0, %1 : vector<1x256xf32>
    %3 = arith.maximumf %0, %1 : vector<1x256xf32>
    %c2 = arith.constant 2 : index
    %c0_2 = arith.constant 0 : index
    %4 = vector.load %arg1[%c2, %c0_2] : memref<4x256xf32, #tpu.memory_space<vmem>>, vector<1x256xf32>
    %5 = arith.addf %2, %4 : vector<1x256xf32>
    %6 = arith.maximumf %3, %4 : vector<1x256xf32>
    %c3 = arith.constant 3 : index
    %c0_3 = arith.constant 0 : index
    %7 = vector.load %arg1[%c3, %c0_3] : memref<4x256xf32, #tpu.memory_space<vmem>>, vector<1x256xf32>
    %8 = arith.addf %5, %7 : vector<1x256xf32>
    %9 = arith.maximumf %6, %7 : vector<1x256xf32>
    %cst = arith.constant 1.250000e-01 : f32
    %10 = vector.broadcast %cst : f32 to vector<1x256xf32>
    %11 = arith.mulf %8, %10 : vector<1x256xf32>
    %cst_4 = arith.constant 5.000000e-01 : f32
    %12 = vector.broadcast %cst_4 : f32 to vector<1x256xf32>
    %13 = arith.mulf %9, %12 : vector<1x256xf32>
    %14 = arith.addf %11, %13 : vector<1x256xf32>
    %c0_5 = arith.constant 0 : index
    %c0_6 = arith.constant 0 : index
    %15 = vector.load %arg2[%c0_5, %c0_6] : memref<4x1xf32, #tpu.memory_space<vmem>>, vector<4x1xf32>
    %c0_7 = arith.constant 0 : index
    %c0_8 = arith.constant 0 : index
    %16 = vector.load %arg3[%c0_7, %c0_8] : memref<4x256xf32, #tpu.memory_space<vmem>>, vector<4x256xf32>
    %17 = vector.broadcast %15 : vector<4x1xf32> to vector<4x256xf32>
    %18 = arith.mulf %17, %16 : vector<4x256xf32>
    %19 = vector.broadcast %14 : vector<1x256xf32> to vector<4x256xf32>
    %20 = arith.addf %19, %18 : vector<4x256xf32>
    %c0_9 = arith.constant 0 : index
    %c0_10 = arith.constant 0 : index
    %21 = vector.load %arg4[%c0_9, %c0_10] : memref<4x256xf32, #tpu.memory_space<vmem>>, vector<4x256xf32>
    tpu.vector_store %arg4[%c0_9, %c0_10], %20 {strides = array<i32>} : memref<4x256xf32, #tpu.memory_space<vmem>>, vector<4x256xf32>,
    return
  }
  func.func @transform_0(%arg0: i32) -> (i32, i32) {
    %c0_i32 = arith.constant 0 : i32
    %c0_i32_0 = arith.constant 0 : i32
    return %c0_i32, %arg0 : i32, i32
  }
  func.func @transform_1(%arg0: i32) -> (i32, i32) {
    %c0_i32 = arith.constant 0 : i32
    %c0_i32_0 = arith.constant 0 : i32
    %c0_i32_1 = arith.constant 0 : i32
    return %c0_i32, %c0_i32_0 : i32, i32
  }
  func.func @transform_2(%arg0: i32) -> (i32, i32) {
    %c0_i32 = arith.constant 0 : i32
    %c0_i32_0 = arith.constant 0 : i32
    return %c0_i32, %arg0 : i32, i32
  }
  func.func @transform_3(%arg0: i32) -> (i32, i32) {
    %c0_i32 = arith.constant 0 : i32
    %c0_i32_0 = arith.constant 0 : i32
    return %c0_i32, %arg0 : i32, i32
  }
}

</mosaic_0001>

<llo_original>
// kernel: tpu_custom_call.1
$region0: #{tpu_custom_call.1}
  #allocation0 [shape = 'u32[]', space=smem, size = 0x4, offset = 0x4, fixed_abs, tag = 'smem constant byte address 0x4 - core index']
  #allocation1 [shape = 'u32[72,128]{1,0:T(1,128)}', space=vmem, size = 0x9000, scoped, tag = 'internal scratch']
  %s0 = inlined_call_operand.hbm [shape: f32[4,256], index: 0, kind: input, shape index: {}]
  %s1 = inlined_call_operand.vmem [shape: f32[4,1], index: 1, kind: input, shape index: {}]
  %s2 = inlined_call_operand.hbm [shape: f32[4,256], index: 2, kind: input, shape index: {}]
  %s3 = inlined_call_operand.hbm [shape: f32[4,256], index: 3, kind: output, shape index: {}]
  %s4 = sld [smem:[#allocation0]]
  $region30: #{tpu_custom_call.1} parent=0
    _
  %s6 = ssub.s32 1, %s4
  %s7 = scalar_select 0, %s6, %s4
  $region1: #{tpu_custom_call.1} parent=0
    #allocation2 [shape = 'u8[4096]{0}', space=vmem, size = 0x1000, scoped, tag = 'input window, operand 0, single buffered']
    #allocation3 [shape = 's32[1]{0}', space=sflag, size = 0x4, scoped, tag = 'scoped memory for tpu_custom_call.1']
    #allocation4 [shape = 's32[1]{0}', space=sflag, size = 0x4, scoped, tag = 'scoped memory for tpu_custom_call.1']
    #allocation5 [shape = 'u8[4096]{0}', space=vmem, size = 0x1000, scoped, tag = 'input window, operand 2, single buffered']
    #allocation6 [shape = 's32[1]{0}', space=sflag, size = 0x4, scoped, tag = 'scoped memory for tpu_custom_call.1']
    #allocation7 [shape = 'u8[4096]{0}', space=vmem, size = 0x1000, scoped, tag = 'output window, operand 0, single buffered']
    %8 = vsyncpa [#allocation3], 0
    %9 = vsyncpa [#allocation6], 0
    %10 = vsyncpa [#allocation4], 0
    // Predicated region
    $region2: #{tpu_custom_call.1} parent=1 // pred_check
      _
    $region3: #{tpu_custom_call.1} parent=1 // pred_check_branch
      %12 = sbr.rel (0) target = $region5
    $region4: #{tpu_custom_call.1} parent=1 // pred_region
      %14 = vsyncadd [#allocation3], 0
      %s16 = sshll.u32 %s0, 4
      %s17 = int_to_ptr.hbm [resolvable:$true] %s16
      %s18 = sshll.u32 [#allocation2], 4
      %s19 = int_to_ptr.vmem [resolvable:$true] %s18
      %21 = dma.hbm_to_vmem [thread:$0]  %s17, 128, %s19, [#allocation3]
    $region5: #{tpu_custom_call.1} parent=1 // pred_fallthru
      _
    // Predicated region
    $region6: #{tpu_custom_call.1} parent=1 // pred_check
      _
    $region7: #{tpu_custom_call.1} parent=1 // pred_check_branch
      %23 = sbr.rel (0) target = $region9
    $region8: #{tpu_custom_call.1} parent=1 // pred_region
      _
    $region9: #{tpu_custom_call.1} parent=1 // pred_fallthru
      _
    // Predicated region
    $region10: #{tpu_custom_call.1} parent=1 // pred_check
      _
    $region11: #{tpu_custom_call.1} parent=1 // pred_check_branch
      %25 = sbr.rel (0) target = $region13
    $region12: #{tpu_custom_call.1} parent=1 // pred_region
      %27 = vsyncadd [#allocation6], 0
      %s29 = sshll.u32 %s2, 4
      %s30 = int_to_ptr.hbm [resolvable:$true] %s29
      %s31 = sshll.u32 [#allocation5], 4
      %s32 = int_to_ptr.vmem [resolvable:$true] %s31
      %34 = dma.hbm_to_vmem [thread:$0]  %s30, 128, %s32, [#allocation6]
    $region13: #{tpu_custom_call.1} parent=1 // pred_fallthru
      _
    // Predicated region
    $region14: #{tpu_custom_call.1} parent=1 // pred_check
      _
    $region15: #{tpu_custom_call.1} parent=1 // pred_check_branch
      %36 = sbr.rel (0) target = $region17
    $region16: #{tpu_custom_call.1} parent=1 // pred_region
      %38 = dma.done [#allocation3], 128
    $region17: #{tpu_custom_call.1} parent=1 // pred_fallthru
      _
    // Predicated region
    $region18: #{tpu_custom_call.1} parent=1 // pred_check
      _
    $region19: #{tpu_custom_call.1} parent=1 // pred_check_branch
      %40 = sbr.rel (0) target = $region21
    $region20: #{tpu_custom_call.1} parent=1 // pred_region
      %42 = dma.done [#allocation6], 128
    $region21: #{tpu_custom_call.1} parent=1 // pred_fallthru
      _
    %v43 = vld [vmem:[#allocation2] ss:$4 sm:$0x3]
    %s44 = scalar_lea.vmem [#allocation2], 1
    %v45 = vld [vmem:[%s44] ss:$4 sm:$0x3]
    %v46 = vadd.f32 %v43, %v45
    %v47 = vmax.f32 %v43, %v45
    %s48 = scalar_lea.vmem [#allocation2], 2
    %v49 = vld [vmem:[%s48] ss:$4 sm:$0x3]
    %v50 = vadd.f32 %v46, %v49
    %v51 = vmax.f32 %v47, %v49
    %s52 = scalar_lea.vmem [#allocation2], 3
    %v53 = vld [vmem:[%s52] ss:$4 sm:$0x3]
    %v54 = vadd.f32 %v50, %v53
    %v55 = vmax.f32 %v51, %v53
    %v56 = vmul.f32 %v54, 0.125
    %v57 = vmul.f32 %v55, 0.5
    %v58 = vadd.f32 %v56, %v57
    %v59 = vld [vmem:[%s1] sm:$0xf]
    %v60 = vld [vmem:[#allocation5] sm:$0xff]
    %62 = vset.pattern.permute.xlu0 0
    %63 = vperm.xlu0 %62, %v59
    %v64 = vpop.permute.xlu0 %63
    %67 = vst [vmem:[#allocation1] ss:$2 sm:$0xff] %v60
    %v68 = vld.sshfl [vmem:[#allocation1] sm:$0xff pattern:$0x75316420]
    %v69 = vld.sshfl [vmem:[#allocation1 + $0x8] sm:$0xff pattern:$0x75316420]
    %v72 = vmul.f32 %v64, %v68
    %v73 = vmul.f32 %v64, %v69
    %v75 = vperm.slane %v58, 0
    %v76 = vperm.slane %v58, 1
    %v79 = vadd.f32 %v75, %v72
    %v80 = vadd.f32 %v76, %v73
    %v83 = vrot.slane %v80, 4
    %vm84 = vcmask 1043456
    %v85 = vsel %vm84, %v79, %v83
    %87 = vst [vmem:[#allocation7] sm:$0xff] %v85
    // Predicated region
    $region22: #{tpu_custom_call.1} parent=1 // pred_check
      _
    $region23: #{tpu_custom_call.1} parent=1 // pred_check_branch
      %89 = sbr.rel (0) target = $region25
    $region24: #{tpu_custom_call.1} parent=1 // pred_region
      %91 = vsyncadd [#allocation4], 0
      %s93 = sshll.u32 [#allocation7], 4
      %s94 = int_to_ptr.vmem [resolvable:$true] %s93
      %s95 = sshll.u32 %s3, 4
      %s96 = int_to_ptr.hbm [resolvable:$true] %s95
      %98 = dma.vmem_to_hbm [thread:$0]  %s94, 128, %s96, [#allocation4]
    $region25: #{tpu_custom_call.1} parent=1 // pred_fallthru
      _
    // Predicated region
    $region26: #{tpu_custom_call.1} parent=1 // pred_check
      _
    $region27: #{tpu_custom_call.1} parent=1 // pred_check_branch
      %100 = sbr.rel (0) target = $region29
    $region28: #{tpu_custom_call.1} parent=1 // pred_region
      %102 = dma.done [#allocation4], 128
    $region29: #{tpu_custom_call.1} parent=1 // pred_fallthru
      _
    %103 = vsyncpa [#allocation3], 1
    %104 = vsyncpa [#allocation6], 1
    %105 = vsyncpa [#allocation4], 1

</llo_original>
